<compile_context>
chip_gen: v5e
topology: v5e:2x2
jax: 0.10.0
libtpu: 0.0.40
codegen_flags: <defaults>
</compile_context>

<pallas_src>
import jax
import jax.numpy as jnp
import numpy as np
from jax.experimental import pallas as pl
from jax.experimental.pallas import tpu as pltpu

B_CLASSES = 8
N1_CLASSES = 2
N2_CLASSES = 11
N3_CLASSES = 4
TOTAL_CLASSES = B_CLASSES + N1_CLASSES + N2_CLASSES + N3_CLASSES  # 25
OUT_CLASSES = 15
N_PAD = 128  # lane-dense width for logits / output

B_OFF = 0
N1_OFF = B_OFF + B_CLASSES      # 8
N2_OFF = N1_OFF + N1_CLASSES    # 10
N3_OFF = N2_OFF + N2_CLASSES    # 21

_NEG = -1e30


def _round_up(x, m):
    return ((x + m - 1) // m) * m


def _selection_matrices():
    """(3, N_PAD, N_PAD) 0/1 matrices; combined = max_v(probs @ sel[v])."""
    sel = np.zeros((3, N_PAD, N_PAD), dtype=np.float32)
    # view 0: n3 passthrough (out 0..3), b head (out 4..11), n2 tail (out 12..14)
    for j in range(N3_CLASSES):
        sel[0, N3_OFF + j, j] = 1.0
    for j in range(B_CLASSES):
        sel[0, B_OFF + j, 4 + j] = 1.0
    for j in range(3):
        sel[0, N2_OFF + 8 + j, 12 + j] = 1.0
    # view 1: n2 head cols 0..7 -> out 4..11
    for j in range(8):
        sel[1, N2_OFF + j, 4 + j] = 1.0
    # view 2: n1 head -> a2c (out 4) and a4c (out 6)
    sel[2, N1_OFF + 0, 4] = 1.0
    sel[2, N1_OFF + 1, 6] = 1.0
    return jnp.asarray(sel)


def msp_kernel(x_ref, w_ref, bias_ref, sel_ref, o_ref, acc_ref):
    k = pl.program_id(1)

    @pl.when(k == 0)
    def _init():
        # Fold the bias into the accumulator init (added exactly once).
        acc_ref[...] = jnp.zeros_like(acc_ref) + bias_ref[...]

    # bf16 x bf16 -> f32 accumulate on the MXU.
    acc_ref[...] += jnp.dot(x_ref[...], w_ref[...],
                            preferred_element_type=jnp.float32)

    @pl.when(k == pl.num_programs(1) - 1)
    def _finalize():
        logits = acc_ref[...]                       # (TB, 128) f32, cols 0..24 valid
        lane = jax.lax.broadcasted_iota(jnp.int32, logits.shape, 1)
        m_b = lane < N1_OFF
        m_n1 = (lane >= N1_OFF) & (lane < N2_OFF)
        m_n2 = (lane >= N2_OFF) & (lane < N3_OFF)
        m_n3 = (lane >= N3_OFF) & (lane < TOTAL_CLASSES)
        valid = lane < TOTAL_CLASSES

        def seg_max(mask):
            return jnp.max(jnp.where(mask, logits, _NEG), axis=-1, keepdims=True)

        mx = jnp.where(m_b, seg_max(m_b),
             jnp.where(m_n1, seg_max(m_n1),
             jnp.where(m_n2, seg_max(m_n2), seg_max(m_n3))))
        # One exp pass implements all four per-segment softmaxes; pad lanes -> 0.
        e = jnp.exp(jnp.where(valid, logits - mx, _NEG))

        def seg_sum(mask):
            return jnp.sum(jnp.where(mask, e, 0.0), axis=-1, keepdims=True)

        denom = jnp.where(m_b, seg_sum(m_b),
                jnp.where(m_n1, seg_sum(m_n1),
                jnp.where(m_n2, seg_sum(m_n2), seg_sum(m_n3))))
        probs = e / denom                            # (TB, 128), all 4 softmaxes

        # 15 combined outputs = elementwise max of three statically selected
        # views (0/1 selection matmuls; each output column has <=1 source per
        # view so the products are exact, and probs > 0 so max-with-0 is a noop).
        g0 = jnp.dot(probs, sel_ref[0], preferred_element_type=jnp.float32)
        g1 = jnp.dot(probs, sel_ref[1], preferred_element_type=jnp.float32)
        g2 = jnp.dot(probs, sel_ref[2], preferred_element_type=jnp.float32)
        o_ref[...] = jnp.maximum(jnp.maximum(g0, g1), g2).astype(o_ref.dtype)


def msp_forward(x_nchw, w, bias, *, tb=512, tk=4096):
    """x_nchw: (B, C, H, W) float.  w: (D, 25), bias: (25,).  Returns (B, 15) f32.

    Default tiles (tb=512, tk=4096 in bf16, ~11 MiB double-buffered footprint)
    fit v5e's 16 MiB default scoped VMEM; bump tk to 8192 on v6e (128 MiB VMEM),
    keep <= ~48 MiB total on v7x (64 MiB VMEM).
    """
    B = x_nchw.shape[0]
    x_flat = x_nchw.reshape(B, -1).astype(jnp.bfloat16)   # cast once in the wrapper
    D = x_flat.shape[1]

    # Tile sizes obeying the (8, 128) constraint; pad so the grid divides evenly.
    TB = min(tb, _round_up(B, 8))
    TK = min(tk, _round_up(D, 128))
    B_pad = _round_up(B, TB)
    D_pad = _round_up(D, TK)

    x_p = jnp.pad(x_flat, ((0, B_pad - B), (0, D_pad - D)))
    w_p = jnp.pad(w.astype(jnp.bfloat16),
                  ((0, D_pad - D), (0, N_PAD - TOTAL_CLASSES)))
    b_p = jnp.pad(bias.reshape(1, -1).astype(jnp.float32),
                  ((0, 0), (0, N_PAD - TOTAL_CLASSES)))
    sel = _selection_matrices()

    grid = (B_pad // TB, D_pad // TK)
    out = pl.pallas_call(
        msp_kernel,
        out_shape=jax.ShapeDtypeStruct((B_pad, N_PAD), jnp.float32),
        grid_spec=pltpu.PrefetchScalarGridSpec(
            num_scalar_prefetch=0,
            grid=grid,
            in_specs=[
                pl.BlockSpec((TB, TK), lambda i, k: (i, k)),          # x tile
                pl.BlockSpec((TK, N_PAD), lambda i, k: (k, 0)),       # W tile
                pl.BlockSpec((1, N_PAD), lambda i, k: (0, 0)),        # bias
                pl.BlockSpec((3, N_PAD, N_PAD), lambda i, k: (0, 0, 0)),  # selectors
            ],
            out_specs=pl.BlockSpec((TB, N_PAD), lambda i, k: (i, 0)),
            scratch_shapes=[pltpu.VMEM((TB, N_PAD), jnp.float32)],
        ),
        compiler_params=pltpu.CompilerParams(
            dimension_semantics=("parallel", "arbitrary"),
            vmem_limit_bytes=32 * 1024 * 1024,
        ),
        cost_estimate=pl.CostEstimate(
            flops=2 * B_pad * D_pad * N_PAD,
            transcendentals=B_pad * N_PAD,
            bytes_accessed=(B_pad * D_pad * 2 + D_pad * N_PAD * 2
                            + B_pad * N_PAD * 4 + 3 * N_PAD * N_PAD * 4),
        ),
    )(x_p, w_p, b_p, sel)
    return out[:B, :OUT_CLASSES]


def reference_forward(x_nchw, w, bias):
    """Plain-JAX reference reproducing MSP.forward (same bf16 operand cast)."""
    B = x_nchw.shape[0]
    x_flat = x_nchw.reshape(B, -1).astype(jnp.bfloat16).astype(jnp.float32)
    w32 = w.astype(jnp.bfloat16).astype(jnp.float32)
    logits = x_flat @ w32 + bias.reshape(1, -1).astype(jnp.float32)
    b_prob = jax.nn.softmax(logits[:, B_OFF:B_OFF + B_CLASSES], axis=-1)
    n1_prob = jax.nn.softmax(logits[:, N1_OFF:N1_OFF + N1_CLASSES], axis=-1)
    n2_prob = jax.nn.softmax(logits[:, N2_OFF:N2_OFF + N2_CLASSES], axis=-1)
    n3_prob = jax.nn.softmax(logits[:, N3_OFF:N3_OFF + N3_CLASSES], axis=-1)
    pred_a2c = jnp.max(jnp.stack([b_prob[:, 0], n1_prob[:, 0], n2_prob[:, 0]], -1), -1)
    pred_a3c = jnp.max(jnp.stack([b_prob[:, 1], n2_prob[:, 1]], -1), -1)
    pred_a4c = jnp.max(jnp.stack([b_prob[:, 2], n1_prob[:, 1], n2_prob[:, 2]], -1), -1)
    pred_a5c = jnp.max(jnp.stack([b_prob[:, 3], n2_prob[:, 3]], -1), -1)
    pred_plax = jnp.max(jnp.stack([b_prob[:, 4], n2_prob[:, 4]], -1), -1)
    pred_plaxav = jnp.max(jnp.stack([b_prob[:, 5], n2_prob[:, 5]], -1), -1)
    pred_psaxav = jnp.max(jnp.stack([b_prob[:, 6], n2_prob[:, 6]], -1), -1)
    pred_psaxpm = jnp.max(jnp.stack([b_prob[:, 7], n2_prob[:, 7]], -1), -1)
    return jnp.stack(
        [n3_prob[:, 0], n3_prob[:, 1], n3_prob[:, 2], n3_prob[:, 3],
         pred_a2c, pred_a3c, pred_a4c, pred_a5c,
         pred_plax, pred_plaxav, pred_psaxav, pred_psaxpm,
         n2_prob[:, 8], n2_prob[:, 9], n2_prob[:, 10]], axis=-1)


if __name__ == "__main__":
    # Small shapes consistent with the module's forward (NCHW image input).
    Bsz, C, H, W = 2, 4, 16, 16
    D = C * H * W  # 1024

    key = jax.random.PRNGKey(0)
    kx, kw, kb = jax.random.split(key, 3)
    x = jax.random.normal(kx, (Bsz, C, H, W), dtype=jnp.float32)
    # Deterministic frozen "view model" weights (fused 4 heads -> 25 classes).
    w = jax.random.normal(kw, (D, TOTAL_CLASSES), dtype=jnp.float32) * 0.02
    bias = jax.random.normal(kb, (TOTAL_CLASSES,), dtype=jnp.float32) * 0.1

    # tk=512 forces a 2-step reduction grid to exercise the accumulator path.
    out = msp_forward(x, w, bias, tk=512)
    out = jax.block_until_ready(out)

    ref = jax.block_until_ready(reference_forward(x, w, bias))
    np.testing.assert_allclose(np.asarray(out), np.asarray(ref),
                               rtol=1e-3, atol=1e-4)

    print("KERNEL_OK")
</pallas_src>

<mosaic_0001>
module attributes {stable_mosaic.version = 11 : i64} {
  func.func @msp_kernel(%arg0: i32, %arg1: i32, %arg2: memref<8x512xbf16, #tpu.memory_space<vmem>>, %arg3: memref<512x128xbf16, #tpu.memory_space<vmem>>, %arg4: memref<1x128xf32, #tpu.memory_space<vmem>>, %arg5: memref<3x128x128xf32, #tpu.memory_space<vmem>>, %arg6: memref<8x128xf32, #tpu.memory_space<vmem>>, %arg7: memref<8x128xf32, #tpu.memory_space<vmem>>) attributes {dimension_semantics = [#tpu.dimension_semantics<parallel>, #tpu.dimension_semantics<arbitrary>], iteration_bounds = array<i64: 1, 2>, scalar_prefetch = 0 : i64, scratch_operands = 1 : i64, tpu.core_type = #tpu.core_type<tc>, window_params = [{transform_indices = @transform_0, window_bounds = array<i64: 8, 512>}, {transform_indices = @transform_1, window_bounds = array<i64: 512, 128>}, {pipeline_mode = #tpu.pipeline_mode<synchronous>, transform_indices = @transform_2, window_bounds = array<i64: 1, 128>}, {pipeline_mode = #tpu.pipeline_mode<synchronous>, transform_indices = @transform_3, window_bounds = array<i64: 3, 128, 128>}, {transform_indices = @transform_4, window_bounds = array<i64: 8, 128>}]} {
    %c0_i32 = arith.constant 0 : i32
    %0 = arith.cmpi eq, %arg1, %c0_i32 : i32
    %1 = arith.extui %0 : i1 to i32
    %c0_i32_0 = arith.constant 0 : i32
    %2 = arith.cmpi ne, %1, %c0_i32_0 : i32
    scf.if %2 {
      %cst_9 = arith.constant 0.000000e+00 : f32
      %12 = vector.broadcast %cst_9 : f32 to vector<8x128xf32>
      %c0_10 = arith.constant 0 : index
      %c0_11 = arith.constant 0 : index
      %13 = vector.load %arg4[%c0_10, %c0_11] : memref<1x128xf32, #tpu.memory_space<vmem>>, vector<1x128xf32>
      %14 = vector.broadcast %13 : vector<1x128xf32> to vector<8x128xf32>
      %15 = arith.addf %12, %14 : vector<8x128xf32>
      %c0_12 = arith.constant 0 : index
      %c0_13 = arith.constant 0 : index
      %16 = vector.load %arg7[%c0_12, %c0_13] : memref<8x128xf32, #tpu.memory_space<vmem>>, vector<8x128xf32>
      tpu.vector_store %arg7[%c0_12, %c0_13], %15 {strides = array<i32>} : memref<8x128xf32, #tpu.memory_space<vmem>>, vector<8x128xf32>,
    } else {
    }
    %c0 = arith.constant 0 : index
    %c0_1 = arith.constant 0 : index
    %3 = vector.load %arg7[%c0, %c0_1] : memref<8x128xf32, #tpu.memory_space<vmem>>, vector<8x128xf32>
    %c0_2 = arith.constant 0 : index
    %c0_3 = arith.constant 0 : index
    %4 = vector.load %arg2[%c0_2, %c0_3] : memref<8x512xbf16, #tpu.memory_space<vmem>>, vector<8x512xbf16>
    %c0_4 = arith.constant 0 : index
    %c0_5 = arith.constant 0 : index
    %5 = vector.load %arg3[%c0_4, %c0_5] : memref<512x128xbf16, #tpu.memory_space<vmem>>, vector<512x128xbf16>
    %cst = arith.constant dense<0.000000e+00> : vector<8x128xf32>
    %6 = tpu.matmul %4, %5, %cst {dimension_numbers = #tpu.dot_dimension_numbers<[1], [0], [0], [1], [0, 0, 1, 1], [], []>} : vector<8x512xbf16>, vector<512x128xbf16>, vector<8x128xf32> -> vector<8x128xf32>
    %7 = arith.addf %3, %6 : vector<8x128xf32>
    %c0_6 = arith.constant 0 : index
    %c0_7 = arith.constant 0 : index
    %8 = vector.load %arg7[%c0_6, %c0_7] : memref<8x128xf32, #tpu.memory_space<vmem>>, vector<8x128xf32>
    tpu.vector_store %arg7[%c0_6, %c0_7], %7 {strides = array<i32>} : memref<8x128xf32, #tpu.memory_space<vmem>>, vector<8x128xf32>,
    %c1_i32 = arith.constant 1 : i32
    %9 = arith.cmpi eq, %arg1, %c1_i32 : i32
    %10 = arith.extui %9 : i1 to i32
    %c0_i32_8 = arith.constant 0 : i32
    %11 = arith.cmpi ne, %10, %c0_i32_8 : i32
    scf.if %11 {
      %c0_9 = arith.constant 0 : index
      %c0_10 = arith.constant 0 : index
      %12 = vector.load %arg7[%c0_9, %c0_10] : memref<8x128xf32, #tpu.memory_space<vmem>>, vector<8x128xf32>
      %13 = tpu.iota {dimensions = array<i32: 1>} : vector<8x128xi32>
      %c8_i32 = arith.constant 8 : i32
      %14 = vector.broadcast %c8_i32 : i32 to vector<8x128xi32>
      %15 = arith.cmpi slt, %13, %14 : vector<8x128xi32>
      %c8_i32_11 = arith.constant 8 : i32
      %16 = vector.broadcast %c8_i32_11 : i32 to vector<8x128xi32>
      %17 = arith.cmpi sge, %13, %16 : vector<8x128xi32>
      %c10_i32 = arith.constant 10 : i32
      %18 = vector.broadcast %c10_i32 : i32 to vector<8x128xi32>
      %19 = arith.cmpi slt, %13, %18 : vector<8x128xi32>
      %20 = arith.andi %17, %19 : vector<8x128xi1>
      %c10_i32_12 = arith.constant 10 : i32
      %21 = vector.broadcast %c10_i32_12 : i32 to vector<8x128xi32>
      %22 = arith.cmpi sge, %13, %21 : vector<8x128xi32>
      %c21_i32 = arith.constant 21 : i32
      %23 = vector.broadcast %c21_i32 : i32 to vector<8x128xi32>
      %24 = arith.cmpi slt, %13, %23 : vector<8x128xi32>
      %25 = arith.andi %22, %24 : vector<8x128xi1>
      %c21_i32_13 = arith.constant 21 : i32
      %26 = vector.broadcast %c21_i32_13 : i32 to vector<8x128xi32>
      %27 = arith.cmpi sge, %13, %26 : vector<8x128xi32>
      %c25_i32 = arith.constant 25 : i32
      %28 = vector.broadcast %c25_i32 : i32 to vector<8x128xi32>
      %29 = arith.cmpi slt, %13, %28 : vector<8x128xi32>
      %30 = arith.andi %27, %29 : vector<8x128xi1>
      %c25_i32_14 = arith.constant 25 : i32
      %31 = vector.broadcast %c25_i32_14 : i32 to vector<8x128xi32>
      %32 = arith.cmpi slt, %13, %31 : vector<8x128xi32>
      %cst_15 = arith.constant -1.000000e+30 : f32
      %33 = vector.broadcast %cst_15 : f32 to vector<8x128xf32>
      %34 = arith.select %15, %12, %33 : vector<8x128xi1>, vector<8x128xf32>
      %cst_16 = arith.constant dense<0xFF800000> : vector<8xf32>
      %35 = vector.multi_reduction <maximumf>, %34, %cst_16 [1] : vector<8x128xf32> to vector<8xf32>
      %36 = vector.shape_cast %35 : vector<8xf32> to vector<8x1xf32>
      %cst_17 = arith.constant -1.000000e+30 : f32
      %37 = vector.broadcast %cst_17 : f32 to vector<8x128xf32>
      %38 = arith.select %20, %12, %37 : vector<8x128xi1>, vector<8x128xf32>
      %cst_18 = arith.constant dense<0xFF800000> : vector<8xf32>
      %39 = vector.multi_reduction <maximumf>, %38, %cst_18 [1] : vector<8x128xf32> to vector<8xf32>
      %40 = vector.shape_cast %39 : vector<8xf32> to vector<8x1xf32>
      %cst_19 = arith.constant -1.000000e+30 : f32
      %41 = vector.broadcast %cst_19 : f32 to vector<8x128xf32>
      %42 = arith.select %25, %12, %41 : vector<8x128xi1>, vector<8x128xf32>
      %cst_20 = arith.constant dense<0xFF800000> : vector<8xf32>
      %43 = vector.multi_reduction <maximumf>, %42, %cst_20 [1] : vector<8x128xf32> to vector<8xf32>
      %44 = vector.shape_cast %43 : vector<8xf32> to vector<8x1xf32>
      %cst_21 = arith.constant -1.000000e+30 : f32
      %45 = vector.broadcast %cst_21 : f32 to vector<8x128xf32>
      %46 = arith.select %30, %12, %45 : vector<8x128xi1>, vector<8x128xf32>
      %cst_22 = arith.constant dense<0xFF800000> : vector<8xf32>
      %47 = vector.multi_reduction <maximumf>, %46, %cst_22 [1] : vector<8x128xf32> to vector<8xf32>
      %48 = vector.shape_cast %47 : vector<8xf32> to vector<8x1xf32>
      %49 = vector.shape_cast %44 : vector<8x1xf32> to vector<8x1xf32>
      %50 = vector.broadcast %49 : vector<8x1xf32> to vector<8x128xf32>
      %51 = vector.shape_cast %48 : vector<8x1xf32> to vector<8x1xf32>
      %52 = vector.broadcast %51 : vector<8x1xf32> to vector<8x128xf32>
      %53 = arith.select %25, %50, %52 : vector<8x128xi1>, vector<8x128xf32>
      %54 = vector.shape_cast %40 : vector<8x1xf32> to vector<8x1xf32>
      %55 = vector.broadcast %54 : vector<8x1xf32> to vector<8x128xf32>
      %56 = arith.select %20, %55, %53 : vector<8x128xi1>, vector<8x128xf32>
      %57 = vector.shape_cast %36 : vector<8x1xf32> to vector<8x1xf32>
      %58 = vector.broadcast %57 : vector<8x1xf32> to vector<8x128xf32>
      %59 = arith.select %15, %58, %56 : vector<8x128xi1>, vector<8x128xf32>
      %60 = arith.subf %12, %59 : vector<8x128xf32>
      %cst_23 = arith.constant -1.000000e+30 : f32
      %61 = vector.broadcast %cst_23 : f32 to vector<8x128xf32>
      %62 = arith.select %32, %60, %61 : vector<8x128xi1>, vector<8x128xf32>
      %63 = math.exp %62 : vector<8x128xf32>
      %cst_24 = arith.constant 0.000000e+00 : f32
      %64 = vector.broadcast %cst_24 : f32 to vector<8x128xf32>
      %65 = arith.select %15, %63, %64 : vector<8x128xi1>, vector<8x128xf32>
      %cst_25 = arith.constant dense<0.000000e+00> : vector<8xf32>
      %66 = vector.multi_reduction <add>, %65, %cst_25 [1] : vector<8x128xf32> to vector<8xf32>
      %67 = vector.shape_cast %66 : vector<8xf32> to vector<8x1xf32>
      %cst_26 = arith.constant 0.000000e+00 : f32
      %68 = vector.broadcast %cst_26 : f32 to vector<8x128xf32>
      %69 = arith.select %20, %63, %68 : vector<8x128xi1>, vector<8x128xf32>
      %cst_27 = arith.constant dense<0.000000e+00> : vector<8xf32>
      %70 = vector.multi_reduction <add>, %69, %cst_27 [1] : vector<8x128xf32> to vector<8xf32>
      %71 = vector.shape_cast %70 : vector<8xf32> to vector<8x1xf32>
      %cst_28 = arith.constant 0.000000e+00 : f32
      %72 = vector.broadcast %cst_28 : f32 to vector<8x128xf32>
      %73 = arith.select %25, %63, %72 : vector<8x128xi1>, vector<8x128xf32>
      %cst_29 = arith.constant dense<0.000000e+00> : vector<8xf32>
      %74 = vector.multi_reduction <add>, %73, %cst_29 [1] : vector<8x128xf32> to vector<8xf32>
      %75 = vector.shape_cast %74 : vector<8xf32> to vector<8x1xf32>
      %cst_30 = arith.constant 0.000000e+00 : f32
      %76 = vector.broadcast %cst_30 : f32 to vector<8x128xf32>
      %77 = arith.select %30, %63, %76 : vector<8x128xi1>, vector<8x128xf32>
      %cst_31 = arith.constant dense<0.000000e+00> : vector<8xf32>
      %78 = vector.multi_reduction <add>, %77, %cst_31 [1] : vector<8x128xf32> to vector<8xf32>
      %79 = vector.shape_cast %78 : vector<8xf32> to vector<8x1xf32>
      %80 = vector.shape_cast %75 : vector<8x1xf32> to vector<8x1xf32>
      %81 = vector.broadcast %80 : vector<8x1xf32> to vector<8x128xf32>
      %82 = vector.shape_cast %79 : vector<8x1xf32> to vector<8x1xf32>
      %83 = vector.broadcast %82 : vector<8x1xf32> to vector<8x128xf32>
      %84 = arith.select %25, %81, %83 : vector<8x128xi1>, vector<8x128xf32>
      %85 = vector.shape_cast %71 : vector<8x1xf32> to vector<8x1xf32>
      %86 = vector.broadcast %85 : vector<8x1xf32> to vector<8x128xf32>
      %87 = arith.select %20, %86, %84 : vector<8x128xi1>, vector<8x128xf32>
      %88 = vector.shape_cast %67 : vector<8x1xf32> to vector<8x1xf32>
      %89 = vector.broadcast %88 : vector<8x1xf32> to vector<8x128xf32>
      %90 = arith.select %15, %89, %87 : vector<8x128xi1>, vector<8x128xf32>
      %91 = arith.divf %63, %90 : vector<8x128xf32>
      %c0_32 = arith.constant 0 : index
      %c0_33 = arith.constant 0 : index
      %c0_34 = arith.constant 0 : index
      %92 = vector.load %arg5[%c0_32, %c0_33, %c0_34] : memref<3x128x128xf32, #tpu.memory_space<vmem>>, vector<1x128x128xf32>
      %93 = vector.shape_cast %92 : vector<1x128x128xf32> to vector<128x128xf32>
      %cst_35 = arith.constant dense<0.000000e+00> : vector<8x128xf32>
      %94 = tpu.matmul %91, %93, %cst_35 {dimension_numbers = #tpu.dot_dimension_numbers<[1], [0], [0], [1], [0, 0, 1, 1], [], []>} : vector<8x128xf32>, vector<128x128xf32>, vector<8x128xf32> -> vector<8x128xf32>
      %c1 = arith.constant 1 : index
      %c0_36 = arith.constant 0 : index
      %c0_37 = arith.constant 0 : index
      %95 = vector.load %arg5[%c1, %c0_36, %c0_37] : memref<3x128x128xf32, #tpu.memory_space<vmem>>, vector<1x128x128xf32>
      %96 = vector.shape_cast %95 : vector<1x128x128xf32> to vector<128x128xf32>
      %cst_38 = arith.constant dense<0.000000e+00> : vector<8x128xf32>
      %97 = tpu.matmul %91, %96, %cst_38 {dimension_numbers = #tpu.dot_dimension_numbers<[1], [0], [0], [1], [0, 0, 1, 1], [], []>} : vector<8x128xf32>, vector<128x128xf32>, vector<8x128xf32> -> vector<8x128xf32>
      %c2 = arith.constant 2 : index
      %c0_39 = arith.constant 0 : index
      %c0_40 = arith.constant 0 : index
      %98 = vector.load %arg5[%c2, %c0_39, %c0_40] : memref<3x128x128xf32, #tpu.memory_space<vmem>>, vector<1x128x128xf32>
      %99 = vector.shape_cast %98 : vector<1x128x128xf32> to vector<128x128xf32>
      %cst_41 = arith.constant dense<0.000000e+00> : vector<8x128xf32>
      %100 = tpu.matmul %91, %99, %cst_41 {dimension_numbers = #tpu.dot_dimension_numbers<[1], [0], [0], [1], [0, 0, 1, 1], [], []>} : vector<8x128xf32>, vector<128x128xf32>, vector<8x128xf32> -> vector<8x128xf32>
      %101 = arith.maximumf %94, %97 : vector<8x128xf32>
      %102 = arith.maximumf %101, %100 : vector<8x128xf32>
      %c0_42 = arith.constant 0 : index
      %c0_43 = arith.constant 0 : index
      %103 = vector.load %arg6[%c0_42, %c0_43] : memref<8x128xf32, #tpu.memory_space<vmem>>, vector<8x128xf32>
      tpu.vector_store %arg6[%c0_42, %c0_43], %102 {strides = array<i32>} : memref<8x128xf32, #tpu.memory_space<vmem>>, vector<8x128xf32>,
    } else {
    }
    return
  }
  func.func @transform_0(%arg0: i32, %arg1: i32) -> (i32, i32) {
    %c0_i32 = arith.constant 0 : i32
    return %arg0, %arg1 : i32, i32
  }
  func.func @transform_1(%arg0: i32, %arg1: i32) -> (i32, i32) {
    %c0_i32 = arith.constant 0 : i32
    %c0_i32_0 = arith.constant 0 : i32
    return %arg1, %c0_i32 : i32, i32
  }
  func.func @transform_2(%arg0: i32, %arg1: i32) -> (i32, i32) {
    %c0_i32 = arith.constant 0 : i32
    %c0_i32_0 = arith.constant 0 : i32
    %c0_i32_1 = arith.constant 0 : i32
    return %c0_i32, %c0_i32_0 : i32, i32
  }
  func.func @transform_3(%arg0: i32, %arg1: i32) -> (i32, i32, i32) {
    %c0_i32 = arith.constant 0 : i32
    %c0_i32_0 = arith.constant 0 : i32
    %c0_i32_1 = arith.constant 0 : i32
    %c0_i32_2 = arith.constant 0 : i32
    return %c0_i32, %c0_i32_0, %c0_i32_1 : i32, i32, i32
  }
  func.func @transform_4(%arg0: i32, %arg1: i32) -> (i32, i32) {
    %c0_i32 = arith.constant 0 : i32
    %c0_i32_0 = arith.constant 0 : i32
    return %arg0, %c0_i32 : i32, i32
  }
}

</mosaic_0001>

<llo_original>
// kernel: tpu_custom_call.1
$region0: #{tpu_custom_call.1}
  #allocation0 [shape = 'u32[]', space=smem, size = 0x4, offset = 0x4, fixed_abs, tag = 'smem constant byte address 0x4 - core index']
  #allocation1 [shape = 'u32[72,128]{1,0:T(1,128)}', space=vmem, size = 0x9000, scoped, tag = 'internal scratch']
  #allocation2 [shape = 'f32[8,128]{1,0:T(8,128)}', space=vmem, size = 0x1000, scoped, tag = 'scratch operand']
  %s0 = inlined_call_operand.hbm [shape: bf16[8,1024], index: 0, kind: input, shape index: {}]
  %s1 = inlined_call_operand.hbm [shape: bf16[1024,128], index: 1, kind: input, shape index: {}]
  %s2 = inlined_call_operand.vmem [shape: f32[1,128], index: 2, kind: input, shape index: {}]
  %s3 = inlined_call_operand.hbm [shape: f32[3,128,128], index: 3, kind: input, shape index: {}]
  %s4 = inlined_call_operand.hbm [shape: f32[8,128], index: 4, kind: output, shape index: {}]
  %s5 = sld [smem:[#allocation0]]
  $region69: #{tpu_custom_call.1} parent=0
    _
  %s7 = ssub.s32 1, %s5
  %s8 = scalar_select 0, %s7, %s5
  $region1: #{tpu_custom_call.1} parent=0
    #allocation3 [shape = 'u8[16384]{0}', space=vmem, size = 0x4000, scoped, tag = 'input window, operand 0']
    #allocation4 [shape = 's32[2]{0}', space=sflag, size = 0x8, scoped, tag = 'scoped memory for tpu_custom_call.1']
    #allocation5 [shape = 's32[2]{0}', space=sflag, size = 0x8, scoped, tag = 'scoped memory for tpu_custom_call.1']
    #allocation6 [shape = 'u8[262144]{0}', space=vmem, size = 0x40000, scoped, tag = 'input window, operand 1']
    #allocation7 [shape = 's32[2]{0}', space=sflag, size = 0x8, scoped, tag = 'scoped memory for tpu_custom_call.1']
    #allocation8 [shape = 'u8[196608]{0}', space=vmem, size = 0x30000, scoped, tag = 'input window, operand 3, single buffered']
    #allocation9 [shape = 'u8[4096]{0}', space=vmem, size = 0x1000, scoped, tag = 'output window, operand 0, single buffered']
    %9 = vsyncpa [#allocation4], 0
    %s10 = scalar_lea.sflag [#allocation4], 1
    %11 = vsyncpa %s10, 0
    %12 = vsyncpa [#allocation7], 0
    %s13 = scalar_lea.sflag [#allocation7], 1
    %14 = vsyncpa %s13, 0
    %15 = vsyncpa [#allocation5], 0
    loop: start=0, step=1, limit=4
    $region2: #{tpu_custom_call.1} parent=1 // loop_pre_header
      _
    $region3: #{tpu_custom_call.1} parent=1 // loop_header
      %s17 = sphi 0, %s21
      %p18 = scmp.ge.s32.totalorder %s17, 4
      %s24 = sphi 0, %s36
      %s25 = sphi 0, %s32
      %s26 = sphi 0, %s24
      %s27 = sphi 0, %s25
      %s28 = sphi 0, %s26
      %s29 = sphi 0, %s27
      %s41 = sphi 0, %s43
      %s44 = sphi 0, %s41
      %s45 = sphi 0, %s44
      %s61 = sphi 0, %s45
      %s67 = sphi 0, %s69
      %s70 = sphi 0, %s67
      %s71 = sphi 0, %s70
      %s87 = sphi 0, %s71
      %s91 = sphi 0, %s91
      %s93 = sphi 0, %s91
      %s94 = sphi 0, %s93
      %s108 = sphi 0, %s94
      %s112 = sphi 0, %s112
      %s114 = sphi 0, %s112
      %s115 = sphi 0, %s114
      %s129 = sphi 0, %s115
      %s135 = sphi 0, %s137
      %s138 = sphi 0, %s135
      %s139 = sphi 0, %s138
      %s155 = sphi 0, %s139
    $region4: #{tpu_custom_call.1} parent=1 // loop_header_branch
      %20 = sbr.rel (%p18) target = $region8
    $region5: #{tpu_custom_call.1} parent=1 // loop_body
      %s22 = ssub.s32 %s17, 1
      %s23 = ssub.s32 %s17, 2
      %s30 = sadd.s32 1, %s25
      %p31 = scmp.ge.s32.totalorder %s30, 2
      %s32 = scalar_select %p31, 0, %s30
      %s33 = sadd.s32 1, %s24
      %s34 = scalar_select %p31, %s33, %s24
      %p35 = scmp.ge.s32.totalorder %s34, 1
      %s36 = scalar_select %p35, 0, %s34
      %s37 = ssub.s32 %s24, %s36
      %s38 = ssub.s32 %s25, %s32
      %s39 = sor.u32 %s37, %s38
      %p40 = scmp.eq.s32.totalorder %s39, 0
      %s42 = sadd.s32 %s41, 1
      %s43 = scalar_select %p40, %s41, %s42
      %p46 = pneg %p40
      %p47 = scmp.eq.s32.totalorder %s17, 1
      %p48 = por %p46, %p47
      %p49 = scmp.ne.s32.totalorder %s41, %s44
      %p50 = scmp.eq.s32.totalorder %s17, 0
      %p51 = por %p49, %p50
      %p52 = scmp.ne.s32.totalorder %s41, %s44
      %p53 = scmp.eq.s32.totalorder %s22, 1
      %p54 = por %p52, %p53
      %p55 = scmp.ne.s32.totalorder %s44, %s45
      %p56 = scmp.eq.s32.totalorder %s22, 0
      %p57 = por %p55, %p56
      %p58 = scmp.ne.s32.totalorder %s44, %s45
      %p59 = scmp.eq.s32.totalorder %s23, 1
      %p60 = por %p58, %p59
      %p62 = scmp.ne.s32.totalorder %s45, %s61
      %p63 = scmp.eq.s32.totalorder %s23, 0
      %p64 = por %p62, %p63
      %s65 = ssub.s32 %s25, %s32
      %p66 = scmp.eq.s32.totalorder %s65, 0
      %s68 = sadd.s32 %s67, 1
      %s69 = scalar_select %p66, %s67, %s68
      %p72 = pneg %p66
      %p73 = scmp.eq.s32.totalorder %s17, 1
      %p74 = por %p72, %p73
      %p75 = scmp.ne.s32.totalorder %s67, %s70
      %p76 = scmp.eq.s32.totalorder %s17, 0
      %p77 = por %p75, %p76
      %p78 = scmp.ne.s32.totalorder %s67, %s70
      %p79 = scmp.eq.s32.totalorder %s22, 1
      %p80 = por %p78, %p79
      %p81 = scmp.ne.s32.totalorder %s70, %s71
      %p82 = scmp.eq.s32.totalorder %s22, 0
      %p83 = por %p81, %p82
      %p84 = scmp.ne.s32.totalorder %s70, %s71
      %p85 = scmp.eq.s32.totalorder %s23, 1
      %p86 = por %p84, %p85
      %p88 = scmp.ne.s32.totalorder %s71, %s87
      %p89 = scmp.eq.s32.totalorder %s23, 0
      %p90 = por %p88, %p89
      %s92 = sadd.s32 %s91, 1
      %p95 = scmp.eq.s32.totalorder %s17, 1
      %p96 = scmp.ne.s32.totalorder %s91, %s93
      %p97 = scmp.eq.s32.totalorder %s17, 0
      %p98 = por %p96, %p97
      %p99 = scmp.ne.s32.totalorder %s91, %s93
      %p100 = scmp.eq.s32.totalorder %s22, 1
      %p101 = por %p99, %p100
      %p102 = scmp.ne.s32.totalorder %s93, %s94
      %p103 = scmp.eq.s32.totalorder %s22, 0
      %p104 = por %p102, %p103
      %p105 = scmp.ne.s32.totalorder %s93, %s94
      %p106 = scmp.eq.s32.totalorder %s23, 1
      %p107 = por %p105, %p106
      %p109 = scmp.ne.s32.totalorder %s94, %s108
      %p110 = scmp.eq.s32.totalorder %s23, 0
      %p111 = por %p109, %p110
      %s113 = sadd.s32 %s112, 1
      %p116 = scmp.eq.s32.totalorder %s17, 1
      %p117 = scmp.ne.s32.totalorder %s112, %s114
      %p118 = scmp.eq.s32.totalorder %s17, 0
      %p119 = por %p117, %p118
      %p120 = scmp.ne.s32.totalorder %s112, %s114
      %p121 = scmp.eq.s32.totalorder %s22, 1
      %p122 = por %p120, %p121
      %p123 = scmp.ne.s32.totalorder %s114, %s115
      %p124 = scmp.eq.s32.totalorder %s22, 0
      %p125 = por %p123, %p124
      %p126 = scmp.ne.s32.totalorder %s114, %s115
      %p127 = scmp.eq.s32.totalorder %s23, 1
      %p128 = por %p126, %p127
      %p130 = scmp.ne.s32.totalorder %s115, %s129
      %p131 = scmp.eq.s32.totalorder %s23, 0
      %p132 = por %p130, %p131
      %s133 = ssub.s32 %s24, %s36
      %p134 = scmp.eq.s32.totalorder %s133, 0
      %s136 = sadd.s32 %s135, 1
      %s137 = scalar_select %p134, %s135, %s136
      %p140 = pneg %p134
      %p141 = scmp.eq.s32.totalorder %s17, 1
      %p142 = por %p140, %p141
      %p143 = scmp.ne.s32.totalorder %s135, %s138
      %p144 = scmp.eq.s32.totalorder %s17, 0
      %p145 = por %p143, %p144
      %p146 = scmp.ne.s32.totalorder %s135, %s138
      %p147 = scmp.eq.s32.totalorder %s22, 1
      %p148 = por %p146, %p147
      %p149 = scmp.ne.s32.totalorder %s138, %s139
      %p150 = scmp.eq.s32.totalorder %s22, 0
      %p151 = por %p149, %p150
      %p152 = scmp.ne.s32.totalorder %s138, %s139
      %p153 = scmp.eq.s32.totalorder %s23, 1
      %p154 = por %p152, %p153
      %p156 = scmp.ne.s32.totalorder %s139, %s155
      %p157 = scmp.eq.s32.totalorder %s23, 0
      %p158 = por %p156, %p157
      %p159 = scmp.le.s32.totalorder 1, %s17
      %p160 = scmp.lt.s32.totalorder %s17, 3
      %p161 = pnand %p159, %p160
      %p162 = pneg %p161
      // Predicated region
      $region9: #{tpu_custom_call.1} parent=5 // pred_check
        _
      $region10: #{tpu_custom_call.1} parent=5 // pred_check_branch
        %164 = sbr.rel (%p161) target = $region12
      $region11: #{tpu_custom_call.1} parent=5 // pred_region
        %s165 = ssub.s32 %s17, 1
        // Predicated region
        $region13: #{tpu_custom_call.1} parent=11 // pred_check
          %p166 = pneg %p104
        $region14: #{tpu_custom_call.1} parent=11 // pred_check_branch
          %168 = sbr.rel (%p166) target = $region16
        $region15: #{tpu_custom_call.1} parent=11 // pred_region
          _
        $region16: #{tpu_custom_call.1} parent=11 // pred_fallthru
          _
        // Predicated region
        $region17: #{tpu_custom_call.1} parent=11 // pred_check
          %p169 = pneg %p125
        $region18: #{tpu_custom_call.1} parent=11 // pred_check_branch
          %171 = sbr.rel (%p169) target = $region20
        $region19: #{tpu_custom_call.1} parent=11 // pred_region
          %173 = vsyncadd [#allocation7], 0
          %s174 = sshll.u32 %s3, 4
          %s175 = int_to_ptr.hbm [resolvable:$true] %s174
          %s176 = sshll.u32 [#allocation8], 4
          %s177 = int_to_ptr.vmem [resolvable:$true] %s176
          %182 = dma.hbm_to_vmem [thread:$0]  %s175, 6144, %s177, [#allocation7], 128, 128, 8
        $region20: #{tpu_custom_call.1} parent=11 // pred_fallthru
          _
      $region12: #{tpu_custom_call.1} parent=5 // pred_fallthru
        _
      %p183 = scmp.lt.s32.totalorder %s17, 2
      // Predicated region
      $region21: #{tpu_custom_call.1} parent=5 // pred_check
        %p184 = pneg %p183
      $region22: #{tpu_custom_call.1} parent=5 // pred_check_branch
        %186 = sbr.rel (%p184) target = $region24
      $region23: #{tpu_custom_call.1} parent=5 // pred_region
        // Predicated region
        $region25: #{tpu_custom_call.1} parent=23 // pred_check
          %p187 = pneg %p51
        $region26: #{tpu_custom_call.1} parent=23 // pred_check_branch
          %189 = sbr.rel (%p187) target = $region28
        $region27: #{tpu_custom_call.1} parent=23 // pred_region
          %s190 = sand.u32 %s41, 1
          %s191 = scalar_lea.sflag [#allocation4], %s190
          %s192 = sand.u32 %s41, 1
          %s193 = smul.addr %s192, 16
          %s194 = scalar_lea.vmem [#allocation3], %s193
          %s195 = smul.u32 4, %s25
          %197 = vsyncadd %s191, 0
          %s198 = smul.addr %s24, 8
          %s199 = sadd.s32 %s195, %s198
          %s200 = smul.addr %s199, 4
          %s201 = scalar_lea.hbm %s0, %s200
          %s203 = sshll.u32 %s201, 4
          %s204 = int_to_ptr.hbm [resolvable:$true] %s203
          %s205 = sshll.u32 %s194, 4
          %s206 = int_to_ptr.vmem [resolvable:$true] %s205
          %208 = dma.hbm_to_vmem [thread:$0]  %s204, 256, %s206, %s191
        $region28: #{tpu_custom_call.1} parent=23 // pred_fallthru
          _
        // Predicated region
        $region29: #{tpu_custom_call.1} parent=23 // pred_check
          %p209 = pneg %p77
        $region30: #{tpu_custom_call.1} parent=23 // pred_check_branch
          %211 = sbr.rel (%p209) target = $region32
        $region31: #{tpu_custom_call.1} parent=23 // pred_region
          %s212 = sand.u32 %s17, 1
          %s213 = scalar_lea.sflag [#allocation7], %s212
          %s214 = sand.u32 %s67, 1
          %s215 = smul.addr %s214, 256
          %s216 = scalar_lea.vmem [#allocation6], %s215
          %s217 = smul.u32 64, %s25
          %219 = vsyncadd %s213, 0
          %s220 = smul.addr %s217, 4
          %s221 = scalar_lea.hbm %s1, %s220
          %s222 = sshll.u32 %s221, 4
          %s223 = int_to_ptr.hbm [resolvable:$true] %s222
          %s224 = sshll.u32 %s216, 4
          %s225 = int_to_ptr.vmem [resolvable:$true] %s224
          %230 = dma.hbm_to_vmem [thread:$0]  %s223, 4096, %s225, %s213, 64, 64, 4
        $region32: #{tpu_custom_call.1} parent=23 // pred_fallthru
          _
      $region24: #{tpu_custom_call.1} parent=5 // pred_fallthru
        _
      %p231 = scmp.le.s32.totalorder 1, %s17
      %p232 = scmp.lt.s32.totalorder %s17, 3
      %p233 = pnand %p231, %p232
      %p234 = pneg %p233
      // Predicated region
      $region33: #{tpu_custom_call.1} parent=5 // pred_check
        _
      $region34: #{tpu_custom_call.1} parent=5 // pred_check_branch
        %236 = sbr.rel (%p233) target = $region36
      $region35: #{tpu_custom_call.1} parent=5 // pred_region
        %s237 = ssub.s32 %s17, 1
        %s238 = sand.u32 %s44, 1
        %s239 = scalar_lea.sflag [#allocation4], %s238
        %s240 = sand.u32 %s44, 1
        %s241 = smul.addr %s240, 16
        %s242 = scalar_lea.vmem [#allocation3], %s241
        // Predicated region
        $region37: #{tpu_custom_call.1} parent=35 // pred_check
          %p243 = pneg %p57
        $region38: #{tpu_custom_call.1} parent=35 // pred_check_branch
          %245 = sbr.rel (%p243) target = $region40
        $region39: #{tpu_custom_call.1} parent=35 // pred_region
          %247 = dma.done %s239, 256
        $region40: #{tpu_custom_call.1} parent=35 // pred_fallthru
          _
        %s248 = sand.u32 %s22, 1
        %s249 = scalar_lea.sflag [#allocation7], %s248
        %s250 = sand.u32 %s70, 1
        %s251 = smul.addr %s250, 256
        %s252 = scalar_lea.vmem [#allocation6], %s251
        // Predicated region
        $region41: #{tpu_custom_call.1} parent=35 // pred_check
          %p253 = pneg %p83
        $region42: #{tpu_custom_call.1} parent=35 // pred_check_branch
          %255 = sbr.rel (%p253) target = $region44
        $region43: #{tpu_custom_call.1} parent=35 // pred_region
          %257 = dma.done %s249, 4096
        $region44: #{tpu_custom_call.1} parent=35 // pred_fallthru
          _
        // Predicated region
        $region45: #{tpu_custom_call.1} parent=35 // pred_check
          %p258 = pneg %p125
        $region46: #{tpu_custom_call.1} parent=35 // pred_check_branch
          %260 = sbr.rel (%p258) target = $region48
        $region47: #{tpu_custom_call.1} parent=35 // pred_region
          %262 = dma.done [#allocation7], 6144
        $region48: #{tpu_custom_call.1} parent=35 // pred_fallthru
          _
        %s263 = sand.u32 %s44, 1
        %s264 = scalar_lea.sflag [#allocation4], %s263
        %s265 = sand.u32 %s44, 1
        %s266 = smul.addr %s265, 16
        %s267 = scalar_lea.vmem [#allocation3], %s266
        %p268 = pneg %p57
        %p269 = pneg %p54
        %s270 = sand.u32 %s22, 1
        %s271 = scalar_lea.sflag [#allocation7], %s270
        %s272 = sand.u32 %s70, 1
        %s273 = smul.addr %s272, 256
        %s274 = scalar_lea.vmem [#allocation6], %s273
        %p275 = pneg %p83
        %p276 = pneg %p80
        %p277 = pneg %p104
        %p278 = pneg %p101
        %p279 = pneg %p125
        %p280 = pneg %p122
        %p281 = pneg %p151
        %p282 = pneg %p148
        %s283 = smul.u32 4, %s27
        %s284 = smul.u32 64, %s27
        %p285 = scmp.eq.s32.totalorder %s27, 0
        // Predicated region
        $region49: #{tpu_custom_call.1} parent=35 // pred_check
          %p286 = pneg %p285
        $region50: #{tpu_custom_call.1} parent=35 // pred_check_branch
          %288 = sbr.rel (%p286) target = $region52
        $region51: #{tpu_custom_call.1} parent=35 // pred_region
          %v289 = vld [vmem:[%s2] sm:$0x1]
          %v291 = vperm.slane %v289, 0
          %v293 = vadd.f32 %v291, 0.0
          %294 = vst [vmem:[#allocation2] sm:$0xff] %v293
        $region52: #{tpu_custom_call.1} parent=35 // pred_fallthru
          _
        %v295 = vld [vmem:[#allocation2] sm:$0xff]
        %v296 = vld [vmem:[%s242] sm:$0xff]
        %v297 = vld [vmem:[%s242 + $0x8] sm:$0xff]
        %v298 = vld [vmem:[%s252] sm:$0xf]
        %v299 = vld [vmem:[%s252 + $0x4] sm:$0xf]
        %v300 = vld [vmem:[%s252 + $0x8] sm:$0xf]
        %v301 = vld [vmem:[%s252 + $0xc] sm:$0xf]
        %v302 = vld [vmem:[%s252 + $0x10] sm:$0xf]
        %v303 = vld [vmem:[%s252 + $0x14] sm:$0xf]
        %v304 = vld [vmem:[%s252 + $0x18] sm:$0xf]
        %v305 = vld [vmem:[%s252 + $0x1c] sm:$0xf]
        %v306 = vld [vmem:[%s252 + $0x20] sm:$0xf]
        %v307 = vld [vmem:[%s252 + $0x24] sm:$0xf]
        %v308 = vld [vmem:[%s252 + $0x28] sm:$0xf]
        %v309 = vld [vmem:[%s252 + $0x2c] sm:$0xf]
        %v310 = vld [vmem:[%s252 + $0x30] sm:$0xf]
        %v311 = vld [vmem:[%s252 + $0x34] sm:$0xf]
        %v312 = vld [vmem:[%s252 + $0x38] sm:$0xf]
        %v313 = vld [vmem:[%s252 + $0x3c] sm:$0xf]
        %v314 = vld [vmem:[%s252 + $0x40] sm:$0xf]
        %v315 = vld [vmem:[%s252 + $0x44] sm:$0xf]
        %v316 = vld [vmem:[%s252 + $0x48] sm:$0xf]
        %v317 = vld [vmem:[%s252 + $0x4c] sm:$0xf]
        %v318 = vld [vmem:[%s252 + $0x50] sm:$0xf]
        %v319 = vld [vmem:[%s252 + $0x54] sm:$0xf]
        %v320 = vld [vmem:[%s252 + $0x58] sm:$0xf]
        %v321 = vld [vmem:[%s252 + $0x5c] sm:$0xf]
        %v322 = vld [vmem:[%s252 + $0x60] sm:$0xf]
        %v323 = vld [vmem:[%s252 + $0x64] sm:$0xf]
        %v324 = vld [vmem:[%s252 + $0x68] sm:$0xf]
        %v325 = vld [vmem:[%s252 + $0x6c] sm:$0xf]
        %v326 = vld [vmem:[%s252 + $0x70] sm:$0xf]
        %v327 = vld [vmem:[%s252 + $0x74] sm:$0xf]
        %v328 = vld [vmem:[%s252 + $0x78] sm:$0xf]
        %v329 = vld [vmem:[%s252 + $0x7c] sm:$0xf]
        %v330 = vld [vmem:[%s252 + $0x80] sm:$0xf]
        %v331 = vld [vmem:[%s252 + $0x84] sm:$0xf]
        %v332 = vld [vmem:[%s252 + $0x88] sm:$0xf]
        %v333 = vld [vmem:[%s252 + $0x8c] sm:$0xf]
        %v334 = vld [vmem:[%s252 + $0x90] sm:$0xf]
        %v335 = vld [vmem:[%s252 + $0x94] sm:$0xf]
        %v336 = vld [vmem:[%s252 + $0x98] sm:$0xf]
        %v337 = vld [vmem:[%s252 + $0x9c] sm:$0xf]
        %v338 = vld [vmem:[%s252 + $0xa0] sm:$0xf]
        %v339 = vld [vmem:[%s252 + $0xa4] sm:$0xf]
        %v340 = vld [vmem:[%s252 + $0xa8] sm:$0xf]
        %v341 = vld [vmem:[%s252 + $0xac] sm:$0xf]
        %v342 = vld [vmem:[%s252 + $0xb0] sm:$0xf]
        %v343 = vld [vmem:[%s252 + $0xb4] sm:$0xf]
        %v344 = vld [vmem:[%s252 + $0xb8] sm:$0xf]
        %v345 = vld [vmem:[%s252 + $0xbc] sm:$0xf]
        %v346 = vld [vmem:[%s252 + $0xc0] sm:$0xf]
        %v347 = vld [vmem:[%s252 + $0xc4] sm:$0xf]
        %v348 = vld [vmem:[%s252 + $0xc8] sm:$0xf]
        %v349 = vld [vmem:[%s252 + $0xcc] sm:$0xf]
        %v350 = vld [vmem:[%s252 + $0xd0] sm:$0xf]
        %v351 = vld [vmem:[%s252 + $0xd4] sm:$0xf]
        %v352 = vld [vmem:[%s252 + $0xd8] sm:$0xf]
        %v353 = vld [vmem:[%s252 + $0xdc] sm:$0xf]
        %v354 = vld [vmem:[%s252 + $0xe0] sm:$0xf]
        %v355 = vld [vmem:[%s252 + $0xe4] sm:$0xf]
        %v356 = vld [vmem:[%s252 + $0xe8] sm:$0xf]
        %v357 = vld [vmem:[%s252 + $0xec] sm:$0xf]
        %v358 = vld [vmem:[%s252 + $0xf0] sm:$0xf]
        %v359 = vld [vmem:[%s252 + $0xf4] sm:$0xf]
        %v360 = vld [vmem:[%s252 + $0xf8] sm:$0xf]
        %v361 = vld [vmem:[%s252 + $0xfc] sm:$0xf]
        %v364 = vunpack.c.l.b16 %v296
        %v365 = vunpack.c.h.b16 %v296
        %v366 = vunpack.c.l.b16 %v297
        %v367 = vunpack.c.h.b16 %v297
        %v368 = vpack.c.b16 %v364, %v364
        %v369 = vpack.c.b16 %v365, %v365
        %v370 = vpack.c.b16 %v366, %v366
        %v371 = vpack.c.b16 %v367, %v367
        %v440 = vunpack.c.l.b16 %v298
        %v441 = vunpack.c.l.b16 %v299
        %v442 = vunpack.c.l.b16 %v300
        %v443 = vunpack.c.l.b16 %v301
        %v444 = vunpack.c.l.b16 %v302
        %v445 = vunpack.c.l.b16 %v303
        %v446 = vunpack.c.l.b16 %v304
        %v447 = vunpack.c.l.b16 %v305
        %v448 = vunpack.c.l.b16 %v306
        %v449 = vunpack.c.l.b16 %v307
        %v450 = vunpack.c.l.b16 %v308
        %v451 = vunpack.c.l.b16 %v309
        %v452 = vunpack.c.l.b16 %v310
        %v453 = vunpack.c.l.b16 %v311
        %v454 = vunpack.c.l.b16 %v312
        %v455 = vunpack.c.l.b16 %v313
        %v456 = vunpack.c.l.b16 %v314
        %v457 = vunpack.c.l.b16 %v315
        %v458 = vunpack.c.l.b16 %v316
        %v459 = vunpack.c.l.b16 %v317
        %v460 = vunpack.c.l.b16 %v318
        %v461 = vunpack.c.l.b16 %v319
        %v462 = vunpack.c.l.b16 %v320
        %v463 = vunpack.c.l.b16 %v321
        %v464 = vunpack.c.l.b16 %v322
        %v465 = vunpack.c.l.b16 %v323
        %v466 = vunpack.c.l.b16 %v324
        %v467 = vunpack.c.l.b16 %v325
        %v468 = vunpack.c.l.b16 %v326
        %v469 = vunpack.c.l.b16 %v327
        %v470 = vunpack.c.l.b16 %v328
        %v471 = vunpack.c.l.b16 %v329
        %v472 = vunpack.c.l.b16 %v330
        %v473 = vunpack.c.l.b16 %v331
        %v474 = vunpack.c.l.b16 %v332
        %v475 = vunpack.c.l.b16 %v333
        %v476 = vunpack.c.l.b16 %v334
        %v477 = vunpack.c.l.b16 %v335
        %v478 = vunpack.c.l.b16 %v336
        %v479 = vunpack.c.l.b16 %v337
        %v480 = vunpack.c.l.b16 %v338
        %v481 = vunpack.c.l.b16 %v339
        %v482 = vunpack.c.l.b16 %v340
        %v483 = vunpack.c.l.b16 %v341
        %v484 = vunpack.c.l.b16 %v342
        %v485 = vunpack.c.l.b16 %v343
        %v486 = vunpack.c.l.b16 %v344
        %v487 = vunpack.c.l.b16 %v345
        %v488 = vunpack.c.l.b16 %v346
        %v489 = vunpack.c.l.b16 %v347
        %v490 = vunpack.c.l.b16 %v348
        %v491 = vunpack.c.l.b16 %v349
        %v492 = vunpack.c.l.b16 %v350
        %v493 = vunpack.c.l.b16 %v351
        %v494 = vunpack.c.l.b16 %v352
        %v495 = vunpack.c.l.b16 %v353
        %v496 = vunpack.c.l.b16 %v354
        %v497 = vunpack.c.l.b16 %v355
        %v498 = vunpack.c.l.b16 %v356
        %v499 = vunpack.c.l.b16 %v357
        %v500 = vunpack.c.l.b16 %v358
        %v501 = vunpack.c.l.b16 %v359
        %v502 = vunpack.c.l.b16 %v360
        %v503 = vunpack.c.l.b16 %v361
        %v504 = vpack.c.b16 %v441, %v440
        %v505 = vpack.c.b16 %v443, %v442
        %v506 = vpack.c.b16 %v445, %v444
        %v507 = vpack.c.b16 %v447, %v446
        %v508 = vpack.c.b16 %v449, %v448
        %v509 = vpack.c.b16 %v451, %v450
        %v510 = vpack.c.b16 %v453, %v452
        %v511 = vpack.c.b16 %v455, %v454
        %v512 = vpack.c.b16 %v457, %v456
        %v513 = vpack.c.b16 %v459, %v458
        %v514 = vpack.c.b16 %v461, %v460
        %v515 = vpack.c.b16 %v463, %v462
        %v516 = vpack.c.b16 %v465, %v464
        %v517 = vpack.c.b16 %v467, %v466
        %v518 = vpack.c.b16 %v469, %v468
        %v519 = vpack.c.b16 %v471, %v470
        %v520 = vpack.c.b16 %v473, %v472
        %v521 = vpack.c.b16 %v475, %v474
        %v522 = vpack.c.b16 %v477, %v476
        %v523 = vpack.c.b16 %v479, %v478
        %v524 = vpack.c.b16 %v481, %v480
        %v525 = vpack.c.b16 %v483, %v482
        %v526 = vpack.c.b16 %v485, %v484
        %v527 = vpack.c.b16 %v487, %v486
        %v528 = vpack.c.b16 %v489, %v488
        %v529 = vpack.c.b16 %v491, %v490
        %v530 = vpack.c.b16 %v493, %v492
        %v531 = vpack.c.b16 %v495, %v494
        %v532 = vpack.c.b16 %v497, %v496
        %v533 = vpack.c.b16 %v499, %v498
        %v534 = vpack.c.b16 %v501, %v500
        %v535 = vpack.c.b16 %v503, %v502
        %568 = vmatpush.bf16.msra.mxu0 %v511
        %569 = vmatpush.bf16.msra.mxu0 %v510
        %570 = vmatpush.bf16.msra.mxu0 %v509
        %571 = vmatpush.bf16.msra.mxu0 %v508
        %572 = vmatpush.bf16.msra.mxu0 %v507
        %573 = vmatpush.bf16.msra.mxu0 %v506
        %574 = vmatpush.bf16.msra.mxu0 %v505
        %575 = vmatpush.bf16.msra.mxu0 %v504
        %576 = vmatmul.bf16.gmra.mxu0 %v368
        %v577 = vpop.f32.mrf.mxu0
        %v578 = vadd.f32 0.0, %v577
        %v579 = vpop.f32.mrf.mxu0
        %580 = vdwg.mxu0
        %581 = vmatpush.bf16.msra.mxu0 %v519
        %582 = vmatpush.bf16.msra.mxu0 %v518
        %583 = vmatpush.bf16.msra.mxu0 %v517
        %584 = vmatpush.bf16.msra.mxu0 %v516
        %585 = vmatpush.bf16.msra.mxu0 %v515
        %586 = vmatpush.bf16.msra.mxu0 %v514
        %587 = vmatpush.bf16.msra.mxu0 %v513
        %588 = vmatpush.bf16.msra.mxu0 %v512
        %589 = vmatmul.bf16.gmra.mxu0 %v369
        %v590 = vpop.f32.mrf.mxu0
        %v591 = vadd.f32 %v578, %v590
        %v592 = vpop.f32.mrf.mxu0
        %593 = vdwg.mxu0
        %594 = vmatpush.bf16.msra.mxu0 %v527
        %595 = vmatpush.bf16.msra.mxu0 %v526
        %596 = vmatpush.bf16.msra.mxu0 %v525
        %597 = vmatpush.bf16.msra.mxu0 %v524
        %598 = vmatpush.bf16.msra.mxu0 %v523
        %599 = vmatpush.bf16.msra.mxu0 %v522
        %600 = vmatpush.bf16.msra.mxu0 %v521
        %601 = vmatpush.bf16.msra.mxu0 %v520
        %602 = vmatmul.bf16.gmra.mxu0 %v370
        %v603 = vpop.f32.mrf.mxu0
        %v604 = vadd.f32 %v591, %v603
        %v605 = vpop.f32.mrf.mxu0
        %606 = vdwg.mxu0
        %607 = vmatpush.bf16.msra.mxu0 %v535
        %608 = vmatpush.bf16.msra.mxu0 %v534
        %609 = vmatpush.bf16.msra.mxu0 %v533
        %610 = vmatpush.bf16.msra.mxu0 %v532
        %611 = vmatpush.bf16.msra.mxu0 %v531
        %612 = vmatpush.bf16.msra.mxu0 %v530
        %613 = vmatpush.bf16.msra.mxu0 %v529
        %614 = vmatpush.bf16.msra.mxu0 %v528
        %615 = vmatmul.bf16.gmra.mxu0 %v371
        %v616 = vpop.f32.mrf.mxu0
        %v617 = vadd.f32 %v604, %v616
        %v618 = vpop.f32.mrf.mxu0
        %619 = vdwg.mxu0
        %v620 = vadd.f32 %v295, %v617
        %621 = vst [vmem:[#allocation2] sm:$0xff] %v620
        %p622 = scmp.eq.s32.totalorder %s27, 1
        // Predicated region
        $region53: #{tpu_custom_call.1} parent=35 // pred_check
          %p623 = pneg %p622
        $region54: #{tpu_custom_call.1} parent=35 // pred_check_branch
          %625 = sbr.rel (%p623) target = $region56
        $region55: #{tpu_custom_call.1} parent=35 // pred_region
          %v626 = vld [vmem:[#allocation2] sm:$0xff]
          %v627 = vlaneseq
          %v628 = vand.u32 %v627, 127
          %vm629 = vcmp.lt.s32.totalorder %v628, 8
          %vm630 = vcmp.ge.s32.totalorder %v628, 8
          %vm631 = vcmp.lt.s32.totalorder %v628, 10
          %vm632 = vmand %vm630, %vm631
          %vm633 = vcmp.ge.s32.totalorder %v628, 10
          %vm634 = vcmp.lt.s32.totalorder %v628, 21
          %vm635 = vmand %vm633, %vm634
          %vm636 = vcmp.ge.s32.totalorder %v628, 21
          %vm637 = vcmp.lt.s32.totalorder %v628, 25
          %vm638 = vmand %vm636, %vm637
          %v639 = vsel %vm629, %v626, -1e+30
          %640 = vmax.xlane.f32.xlu0 %v639
          %v641 = vpop.xlane.xlu0 %640
          %v642 = vsel %vm632, %v626, -1e+30
          %643 = vmax.xlane.f32.xlu0 %v642
          %v644 = vpop.xlane.xlu0 %643
          %v645 = vsel %vm635, %v626, -1e+30
          %646 = vmax.xlane.f32.xlu0 %v645
          %v647 = vpop.xlane.xlu0 %646
          %v648 = vsel %vm638, %v626, -1e+30
          %649 = vmax.xlane.f32.xlu0 %v648
          %v650 = vpop.xlane.xlu0 %649
          %v651 = vsel %vm635, %v647, %v650
          %v652 = vsel %vm632, %v644, %v651
          %v653 = vsel %vm629, %v641, %v652
          %v654 = vsub.f32 %v626, %v653
          %v655 = vsel %vm637, %v654, -1e+30
          %v656 = vmul.f32 %v655, 1.442695
          %v657 = vpow.pop %v656
          %v658 = vsel %vm629, %v657, 0.0
          %659 = vadd.xlane.f32.xlu0 %v658
          %v660 = vpop.xlane.xlu0 %659
          %v661 = vsel %vm632, %v657, 0.0
          %662 = vadd.xlane.f32.xlu0 %v661
          %v663 = vpop.xlane.xlu0 %662
          %v664 = vsel %vm635, %v657, 0.0
          %665 = vadd.xlane.f32.xlu0 %v664
          %v666 = vpop.xlane.xlu0 %665
          %v667 = vsel %vm638, %v657, 0.0
          %668 = vadd.xlane.f32.xlu0 %v667
          %v669 = vpop.xlane.xlu0 %668
          %v670 = vsel %vm635, %v666, %v669
          %v671 = vsel %vm632, %v663, %v670
          %v672 = vsel %vm629, %v660, %v671
          %v673 = vrcp.pop %v672
          %v674 = vmul.f32 %v672, %v673
          %v675 = vsub.f32 1.0, %v674
          %v676 = vmul.f32 %v673, %v675
          %v677 = vadd.f32 %v673, %v676
          %vm678 = vweird.f32 %v672
          %vm679 = vweird.f32 %v673
          %vm680 = vmor %vm678, %vm679
          %v681 = vsel %vm680, %v673, %v677
          %v682 = vand.u32 2147483647, %v672
          %vm683 = vcmp.eq.f32.partialorder %v682, 8.507059e+37
          %v684 = vand.u32 %v672, 2147483648
          %v685 = vor.u32 1.1754944e-38, %v684
          %v686 = vsel %vm683, %v685, %v681
          %v687 = vmul.f32 %v657, %v686
          %v688 = vld [vmem:[#allocation8] sm:$0xff]
          %v689 = vld [vmem:[#allocation8 + $0x8] sm:$0xff]
          %v690 = vld [vmem:[#allocation8 + $0x10] sm:$0xff]
          %v691 = vld [vmem:[#allocation8 + $0x18] sm:$0xff]
          %v692 = vld [vmem:[#allocation8 + $0x20] sm:$0xff]
          %v693 = vld [vmem:[#allocation8 + $0x28] sm:$0xff]
          %v694 = vld [vmem:[#allocation8 + $0x30] sm:$0xff]
          %v695 = vld [vmem:[#allocation8 + $0x38] sm:$0xff]
          %v696 = vld [vmem:[#allocation8 + $0x40] sm:$0xff]
          %v697 = vld [vmem:[#allocation8 + $0x48] sm:$0xff]
          %v698 = vld [vmem:[#allocation8 + $0x50] sm:$0xff]
          %v699 = vld [vmem:[#allocation8 + $0x58] sm:$0xff]
          %v700 = vld [vmem:[#allocation8 + $0x60] sm:$0xff]
          %v701 = vld [vmem:[#allocation8 + $0x68] sm:$0xff]
          %v702 = vld [vmem:[#allocation8 + $0x70] sm:$0xff]
          %v703 = vld [vmem:[#allocation8 + $0x78] sm:$0xff]
          %704 = vmatpush.msra.mxu0 %v703
          %705 = vmatpush.msra.mxu0 %v702
          %706 = vmatpush.msra.mxu0 %v701
          %707 = vmatpush.msra.mxu0 %v700
          %708 = vmatpush.msra.mxu0 %v699
          %709 = vmatpush.msra.mxu0 %v698
          %710 = vmatpush.msra.mxu0 %v697
          %711 = vmatpush.msra.mxu0 %v696
          %712 = vmatpush.msra.mxu0 %v695
          %713 = vmatpush.msra.mxu0 %v694
          %714 = vmatpush.msra.mxu0 %v693
          %715 = vmatpush.msra.mxu0 %v692
          %716 = vmatpush.msra.mxu0 %v691
          %717 = vmatpush.msra.mxu0 %v690
          %718 = vmatpush.msra.mxu0 %v689
          %719 = vmatpush.msra.mxu0 %v688
          %720 = vmatmul.f32.gmra.mxu0 %v687
          %v721 = vpop.f32.mrf.mxu0
          %v722 = vadd.f32 0.0, %v721
          %723 = vdwg.mxu0
          %s724 = scalar_lea.vmem [#allocation8], 128
          %v725 = vld [vmem:[%s724] sm:$0xff]
          %v726 = vld [vmem:[%s724 + $0x8] sm:$0xff]
          %v727 = vld [vmem:[%s724 + $0x10] sm:$0xff]
          %v728 = vld [vmem:[%s724 + $0x18] sm:$0xff]
          %v729 = vld [vmem:[%s724 + $0x20] sm:$0xff]
          %v730 = vld [vmem:[%s724 + $0x28] sm:$0xff]
          %v731 = vld [vmem:[%s724 + $0x30] sm:$0xff]
          %v732 = vld [vmem:[%s724 + $0x38] sm:$0xff]
          %v733 = vld [vmem:[%s724 + $0x40] sm:$0xff]
          %v734 = vld [vmem:[%s724 + $0x48] sm:$0xff]
          %v735 = vld [vmem:[%s724 + $0x50] sm:$0xff]
          %v736 = vld [vmem:[%s724 + $0x58] sm:$0xff]
          %v737 = vld [vmem:[%s724 + $0x60] sm:$0xff]
          %v738 = vld [vmem:[%s724 + $0x68] sm:$0xff]
          %v739 = vld [vmem:[%s724 + $0x70] sm:$0xff]
          %v740 = vld [vmem:[%s724 + $0x78] sm:$0xff]
          %741 = vmatpush.msra.mxu0 %v740
          %742 = vmatpush.msra.mxu0 %v739
          %743 = vmatpush.msra.mxu0 %v738
          %744 = vmatpush.msra.mxu0 %v737
          %745 = vmatpush.msra.mxu0 %v736
          %746 = vmatpush.msra.mxu0 %v735
          %747 = vmatpush.msra.mxu0 %v734
          %748 = vmatpush.msra.mxu0 %v733
          %749 = vmatpush.msra.mxu0 %v732
          %750 = vmatpush.msra.mxu0 %v731
          %751 = vmatpush.msra.mxu0 %v730
          %752 = vmatpush.msra.mxu0 %v729
          %753 = vmatpush.msra.mxu0 %v728
          %754 = vmatpush.msra.mxu0 %v727
          %755 = vmatpush.msra.mxu0 %v726
          %756 = vmatpush.msra.mxu0 %v725
          %757 = vmatmul.f32.gmra.mxu0 %v687
          %v758 = vpop.f32.mrf.mxu0
          %v759 = vadd.f32 0.0, %v758
          %760 = vdwg.mxu0
          %s761 = scalar_lea.vmem [#allocation8], 256
          %v762 = vld [vmem:[%s761] sm:$0xff]
          %v763 = vld [vmem:[%s761 + $0x8] sm:$0xff]
          %v764 = vld [vmem:[%s761 + $0x10] sm:$0xff]
          %v765 = vld [vmem:[%s761 + $0x18] sm:$0xff]
          %v766 = vld [vmem:[%s761 + $0x20] sm:$0xff]
          %v767 = vld [vmem:[%s761 + $0x28] sm:$0xff]
          %v768 = vld [vmem:[%s761 + $0x30] sm:$0xff]
          %v769 = vld [vmem:[%s761 + $0x38] sm:$0xff]
          %v770 = vld [vmem:[%s761 + $0x40] sm:$0xff]
          %v771 = vld [vmem:[%s761 + $0x48] sm:$0xff]
          %v772 = vld [vmem:[%s761 + $0x50] sm:$0xff]
          %v773 = vld [vmem:[%s761 + $0x58] sm:$0xff]
          %v774 = vld [vmem:[%s761 + $0x60] sm:$0xff]
          %v775 = vld [vmem:[%s761 + $0x68] sm:$0xff]
          %v776 = vld [vmem:[%s761 + $0x70] sm:$0xff]
          %v777 = vld [vmem:[%s761 + $0x78] sm:$0xff]
          %778 = vmatpush.msra.mxu0 %v777
          %779 = vmatpush.msra.mxu0 %v776
          %780 = vmatpush.msra.mxu0 %v775
          %781 = vmatpush.msra.mxu0 %v774
          %782 = vmatpush.msra.mxu0 %v773
          %783 = vmatpush.msra.mxu0 %v772
          %784 = vmatpush.msra.mxu0 %v771
          %785 = vmatpush.msra.mxu0 %v770
          %786 = vmatpush.msra.mxu0 %v769
          %787 = vmatpush.msra.mxu0 %v768
          %788 = vmatpush.msra.mxu0 %v767
          %789 = vmatpush.msra.mxu0 %v766
          %790 = vmatpush.msra.mxu0 %v765
          %791 = vmatpush.msra.mxu0 %v764
          %792 = vmatpush.msra.mxu0 %v763
          %793 = vmatpush.msra.mxu0 %v762
          %794 = vmatmul.f32.gmra.mxu0 %v687
          %v795 = vpop.f32.mrf.mxu0
          %v796 = vadd.f32 0.0, %v795
          %797 = vdwg.mxu0
          %v798 = vmax.f32 %v722, %v759
          %v799 = vmax.f32 %v798, %v796
          %800 = vst [vmem:[#allocation9] sm:$0xff] %v799
        $region56: #{tpu_custom_call.1} parent=35 // pred_fallthru
          _
        // Predicated region
        $region57: #{tpu_custom_call.1} parent=35 // pred_check
          %p801 = pneg %p148
        $region58: #{tpu_custom_call.1} parent=35 // pred_check_branch
          %803 = sbr.rel (%p801) target = $region60
        $region59: #{tpu_custom_call.1} parent=35 // pred_region
          %805 = vsyncadd [#allocation5], 0
          %s806 = smul.addr %s26, 8
          %s807 = scalar_lea.hbm %s4, %s806
          %s809 = sshll.u32 [#allocation9], 4
          %s810 = int_to_ptr.vmem [resolvable:$true] %s809
          %s811 = sshll.u32 %s807, 4
          %s812 = int_to_ptr.hbm [resolvable:$true] %s811
          %814 = dma.vmem_to_hbm [thread:$0]  %s810, 128, %s812, [#allocation5]
        $region60: #{tpu_custom_call.1} parent=35 // pred_fallthru
          _
        // Predicated region
        $region61: #{tpu_custom_call.1} parent=35 // pred_check
          %p815 = pneg %p148
        $region62: #{tpu_custom_call.1} parent=35 // pred_check_branch
          %817 = sbr.rel (%p815) target = $region64
        $region63: #{tpu_custom_call.1} parent=35 // pred_region
          %819 = dma.done [#allocation5], 128
        $region64: #{tpu_custom_call.1} parent=35 // pred_fallthru
          _
      $region36: #{tpu_custom_call.1} parent=5 // pred_fallthru
        _
      %p820 = scmp.le.s32.totalorder 2, %s17
      // Predicated region
      $region65: #{tpu_custom_call.1} parent=5 // pred_check
        %p821 = pneg %p820
      $region66: #{tpu_custom_call.1} parent=5 // pred_check_branch
        %823 = sbr.rel (%p821) target = $region68
      $region67: #{tpu_custom_call.1} parent=5 // pred_region
        %s824 = ssub.s32 %s17, 2
      $region68: #{tpu_custom_call.1} parent=5 // pred_fallthru
        _
    $region6: #{tpu_custom_call.1} parent=1 // loop_footer
      %s21 = sadd.s32 1, %s17
    $region7: #{tpu_custom_call.1} parent=1 // loop_footer_branch
      %16 = sbr.rel target = $region3
    $region8: #{tpu_custom_call.1} parent=1 // loop_exit
      _
    %825 = vsyncpa [#allocation4], 1
    %s826 = scalar_lea.sflag [#allocation4], 1
    %827 = vsyncpa %s826, 1
    %828 = vsyncpa [#allocation7], 1
    %s829 = scalar_lea.sflag [#allocation7], 1
    %830 = vsyncpa %s829, 1
    %831 = vsyncpa [#allocation5], 1
    %s832 = scalar_lea.sflag [#allocation5], 1
    %833 = vsyncpa %s832, 1

</llo_original>
